<compile_context>
chip_gen: v6e
topology: v6e:2x2x1
jax: 0.10.0
libtpu: 0.0.40
codegen_flags: <defaults>
</compile_context>

<pallas_src>
import functools

import jax
import jax.numpy as jnp
from jax import lax
from jax.experimental import pallas as pl
from jax.experimental.pallas import tpu as pltpu


def _round_up(a: int, m: int) -> int:
    return (a + m - 1) // m * m


def _cdiv(a: int, b: int) -> int:
    return (a + b - 1) // b


def _vmem_budget_bytes() -> int:
    """~75% of this generation's VMEM (v7x: 64 MiB/TC, v5e/v6e: 128 MiB)."""
    try:
        cap = int(pltpu.get_tpu_info().vmem_capacity_bytes)
    except Exception:
        cap = 64 * 2 ** 20          # conservative fallback = v7x per-TC VMEM
    return (cap * 3) // 4           # leave headroom for compiler scratch/sems


def _shallow_relu_kernel(x_ref, w1_ref, b1_ref, w2_ref, b2_ref, o_ref,
                         *, hc: int, n_hc: int):
    """One batch tile: out = relu(x @ w1 + b1) @ w2^T + b2, H processed in chunks."""
    x = x_ref[...]                                       # (TB, D), reused per chunk
    tb = x.shape[0]

    def chunk(c, acc):
        off = pl.multiple_of(c * hc, 128)                # hc is a 128-multiple
        # Hidden layer chunk on the MXU with f32 accumulate.
        h = jnp.dot(x, w1_ref[:, pl.ds(off, hc)],
                    preferred_element_type=jnp.float32)  # (TB, hc)
        # Bias + ReLU on the VPU (f32 epilogue -- safe on v5e, no bf16 VPU).
        h = jnp.maximum(h + b1_ref[:, pl.ds(off, hc)], 0.0)
        # Output layer (H -> 1): VPU multiply + XLU lane reduce; avoids an
        # (TB, hc) @ (hc, 1) matmul that would use a single MXU output column.
        return acc + jnp.sum(h * w2_ref[:, pl.ds(off, hc)],
                             axis=-1, keepdims=True)     # (TB, 1) f32

    if n_hc == 1:
        # Small H: single pass over the full (un-padded) hidden dimension.
        h = jnp.dot(x, w1_ref[...], preferred_element_type=jnp.float32)
        h = jnp.maximum(h + b1_ref[...], 0.0)
        acc = jnp.sum(h * w2_ref[...], axis=-1, keepdims=True)
    else:
        acc = lax.fori_loop(0, n_hc, chunk,
                            jnp.zeros((tb, 1), jnp.float32),
                            unroll=(n_hc <= 8))

    # b2 is a scalar read from SMEM; (TB, 1) store -- output traffic is tiny.
    o_ref[...] = (acc + b2_ref[0]).astype(o_ref.dtype)


@functools.partial(jax.jit, static_argnames=("use_bf16",))
def shallow_relu(x, w1, b1, w2_row, b2, *, use_bf16: bool = False):
    """x: (B, D); w1: (D, H); b1: (1, H); w2_row: (1, H); b2: (1,) -> (B, 1)."""
    B, D = x.shape
    H = w1.shape[1]
    out_dtype = x.dtype

    if use_bf16:
        # Optional: halve x/w1 HBM traffic; accumulate & epilogue stay f32.
        x = x.astype(jnp.bfloat16)
        w1 = w1.astype(jnp.bfloat16)
    x_itemsize = jnp.dtype(x.dtype).itemsize
    w_itemsize = jnp.dtype(w1.dtype).itemsize

    vmem_budget = _vmem_budget_bytes()

    # ---- Batch tile: size from the x-tile bandwidth budget (~4 MiB), keep the
    # kernel off the per-step-overhead floor for small D, and force >= 2 tiles
    # for B >= 256 so v7x's two TensorCores are both used.
    X_TILE_BYTES = 4 * 2 ** 20
    tb_target = max(256, min(8192, X_TILE_BYTES // max(1, D * x_itemsize)))
    n_tiles = max(1, _cdiv(B, tb_target))
    if B >= 256:
        n_tiles = max(n_tiles, 2)
    TB = _round_up(_cdiv(B, n_tiles), 8)     # 8-aligned; minimal batch padding
    n_tiles = _cdiv(B, TB)
    B_pad = n_tiles * TB
    if B_pad != B:
        x = jnp.pad(x, ((0, B_pad - B), (0, 0)))

    # ---- Hidden-dim chunking: keep live (TB, hc) f32 activations <= ~8 MiB.
    H_ACT_BYTES = 8 * 2 ** 20
    hc_max = max(128, (H_ACT_BYTES // (TB * 4)) // 128 * 128)
    if H <= hc_max:
        n_hc, hc, H_pad = 1, H, H
    else:
        n_hc = _cdiv(H, hc_max)
        hc = _round_up(_cdiv(H, n_hc), 128)  # 128-aligned lane slices
        H_pad = n_hc * hc
    if H_pad != H:
        # Zero padding is exact: relu(0 + 0) * 0 contributes nothing.
        w1 = jnp.pad(w1, ((0, 0), (0, H_pad - H)))
        b1 = jnp.pad(b1, ((0, 0), (0, H_pad - H)))
        w2_row = jnp.pad(w2_row, ((0, 0), (0, H_pad - H)))

    # ---- VMEM estimate counts real allocations: every BlockSpec input is
    # double-buffered by Pallas, including the constant-index resident weights.
    vmem_est = (2 * TB * D * x_itemsize                        # x tiles
                + 2 * (D * H_pad + 2 * H_pad) * w_itemsize     # w1, b1, w2 row
                + 2 * TB * jnp.dtype(out_dtype).itemsize       # out tiles
                + TB * hc * 4 + TB * 4)                        # live f32 h + acc
    vmem_limit = int(min(vmem_budget, max(2 * vmem_est, 32 * 2 ** 20)))
    # TODO(synk): for very large D*H where the double-buffered resident w1
    # exceeds ~half the VMEM budget (v7x first), add a K grid axis marked
    # "arbitrary" with an f32 accumulator instead of keeping w1 fully resident.

    kernel = functools.partial(_shallow_relu_kernel, hc=hc, n_hc=n_hc)
    out = pl.pallas_call(
        kernel,
        out_shape=jax.ShapeDtypeStruct((B_pad, 1), out_dtype),
        grid_spec=pltpu.PrefetchScalarGridSpec(
            num_scalar_prefetch=0,
            grid=(n_tiles,),
            in_specs=[
                pl.BlockSpec((TB, D), lambda i: (i, 0)),        # x: batch-tiled
                pl.BlockSpec((D, H_pad), lambda i: (0, 0)),     # w1: resident
                pl.BlockSpec((1, H_pad), lambda i: (0, 0)),     # b1: resident
                pl.BlockSpec((1, H_pad), lambda i: (0, 0)),     # w2 row: resident
                pl.BlockSpec(memory_space=pltpu.MemorySpace.SMEM),  # b2 scalar
            ],
            out_specs=pl.BlockSpec((TB, 1), lambda i: (i, 0)),
        ),
        compiler_params=pltpu.CompilerParams(
            dimension_semantics=("parallel",),   # megacore on v7x; no-op elsewhere
            vmem_limit_bytes=vmem_limit,
        ),
    )(x, w1, b1, w2_row, b2)

    return out[:B]


def init_params(key, input_dim, hidden_dim, dtype=jnp.float32):
    """Deterministic init mirroring nn.Linear's U(-1/sqrt(fan_in), 1/sqrt(fan_in))."""
    k1, k2, k3, k4 = jax.random.split(key, 4)
    bound1 = 1.0 / jnp.sqrt(input_dim)
    bound2 = 1.0 / jnp.sqrt(hidden_dim)
    # w1 stored pre-transposed relative to PyTorch (out_features, in_features);
    # w2 stored as a (1, hidden_dim) row for the in-kernel multiply+reduce.
    w1 = jax.random.uniform(k1, (input_dim, hidden_dim), dtype, -bound1, bound1)
    b1 = jax.random.uniform(k2, (1, hidden_dim), dtype, -bound1, bound1)
    w2_row = jax.random.uniform(k3, (1, hidden_dim), dtype, -bound2, bound2)
    b2 = jax.random.uniform(k4, (1,), dtype, -bound2, bound2)
    return w1, b1, w2_row, b2


def _reference(x, w1, b1, w2_row, b2):
    return jnp.maximum(x @ w1 + b1, 0.0) @ w2_row.T + b2[None, :]


if __name__ == "__main__":
    key = jax.random.PRNGKey(0)

    # --- Small shapes matching the module spec (single-tile, single H chunk).
    input_dim, hidden_dim, batch = 16, 32, 8
    kx, kp, key = jax.random.split(key, 3)
    x = jax.random.normal(kx, (batch, input_dim), jnp.float32)
    w1, b1, w2_row, b2 = init_params(kp, input_dim, hidden_dim)

    out = jax.block_until_ready(shallow_relu(x, w1, b1, w2_row, b2))
    ref = _reference(x, w1, b1, w2_row, b2)
    assert out.shape == (batch, 1)
    assert jnp.allclose(out, ref, atol=1e-5, rtol=1e-5)

    # --- Larger shape exercising multi-tile batch (v7x 2-TC split), batch
    # padding, and in-kernel hidden-dim chunking.
    input_dim2, hidden_dim2, batch2 = 16, 2048, 2100
    kx2, kp2 = jax.random.split(key)
    x2 = jax.random.normal(kx2, (batch2, input_dim2), jnp.float32)
    w1_2, b1_2, w2_2, b2_2 = init_params(kp2, input_dim2, hidden_dim2)

    out2 = jax.block_until_ready(shallow_relu(x2, w1_2, b1_2, w2_2, b2_2))
    ref2 = _reference(x2, w1_2, b1_2, w2_2, b2_2)
    assert out2.shape == (batch2, 1)
    assert jnp.allclose(out2, ref2, atol=1e-3, rtol=1e-4)

    # NOTE: at toy sizes the run is dominated by pallas_call launch overhead;
    # benchmark production shapes via xprof (min of runs, not perf_counter).
    print("KERNEL_OK")
</pallas_src>

<mosaic_0001>
module attributes {stable_mosaic.version = 11 : i64} {
  func.func @_shallow_relu_kernel(%arg0: i32, %arg1: memref<8x16xf32, #tpu.memory_space<vmem>>, %arg2: memref<16x32xf32, #tpu.memory_space<vmem>>, %arg3: memref<1x32xf32, #tpu.memory_space<vmem>>, %arg4: memref<1x32xf32, #tpu.memory_space<vmem>>, %arg5: memref<1xf32, #tpu.memory_space<smem>>, %arg6: memref<8x1xf32, #tpu.memory_space<vmem>>) attributes {dimension_semantics = [#tpu.dimension_semantics<parallel>], iteration_bounds = array<i64: 1>, scalar_prefetch = 0 : i64, scratch_operands = 0 : i64, tpu.core_type = #tpu.core_type<tc>, window_params = [{transform_indices = @transform_0, window_bounds = array<i64: 8, 16>}, {pipeline_mode = #tpu.pipeline_mode<synchronous>, transform_indices = @transform_1, window_bounds = array<i64: 16, 32>}, {pipeline_mode = #tpu.pipeline_mode<synchronous>, transform_indices = @transform_2, window_bounds = array<i64: 1, 32>}, {pipeline_mode = #tpu.pipeline_mode<synchronous>, transform_indices = @transform_3, window_bounds = array<i64: 1, 32>}, {transform_indices = @transform_4, window_bounds = array<i64: 1>}, {transform_indices = @transform_5, window_bounds = array<i64: 8, 1>}]} {
    %c0 = arith.constant 0 : index
    %c0_0 = arith.constant 0 : index
    %0 = vector.load %arg1[%c0, %c0_0] : memref<8x16xf32, #tpu.memory_space<vmem>>, vector<8x16xf32>
    %c0_1 = arith.constant 0 : index
    %c0_2 = arith.constant 0 : index
    %1 = vector.load %arg2[%c0_1, %c0_2] : memref<16x32xf32, #tpu.memory_space<vmem>>, vector<16x32xf32>
    %cst = arith.constant dense<0.000000e+00> : vector<8x32xf32>
    %2 = tpu.matmul %0, %1, %cst {dimension_numbers = #tpu.dot_dimension_numbers<[1], [0], [0], [1], [0, 0, 1, 1], [], []>} : vector<8x16xf32>, vector<16x32xf32>, vector<8x32xf32> -> vector<8x32xf32>
    %c0_3 = arith.constant 0 : index
    %c0_4 = arith.constant 0 : index
    %3 = vector.load %arg3[%c0_3, %c0_4] : memref<1x32xf32, #tpu.memory_space<vmem>>, vector<1x32xf32>
    %4 = vector.broadcast %3 : vector<1x32xf32> to vector<8x32xf32>
    %5 = arith.addf %2, %4 : vector<8x32xf32>
    %cst_5 = arith.constant 0.000000e+00 : f32
    %6 = vector.broadcast %cst_5 : f32 to vector<8x32xf32>
    %7 = arith.maximumf %5, %6 : vector<8x32xf32>
    %c0_6 = arith.constant 0 : index
    %c0_7 = arith.constant 0 : index
    %8 = vector.load %arg4[%c0_6, %c0_7] : memref<1x32xf32, #tpu.memory_space<vmem>>, vector<1x32xf32>
    %9 = vector.broadcast %8 : vector<1x32xf32> to vector<8x32xf32>
    %10 = arith.mulf %7, %9 : vector<8x32xf32>
    %cst_8 = arith.constant dense<0.000000e+00> : vector<8xf32>
    %11 = vector.multi_reduction <add>, %10, %cst_8 [1] : vector<8x32xf32> to vector<8xf32>
    %12 = vector.shape_cast %11 : vector<8xf32> to vector<8x1xf32>
    %c0_9 = arith.constant 0 : index
    %13 = memref.load %arg5[%c0_9] : memref<1xf32, #tpu.memory_space<smem>>
    %14 = vector.broadcast %13 : f32 to vector<8x1xf32>
    %15 = arith.addf %12, %14 : vector<8x1xf32>
    %c0_10 = arith.constant 0 : index
    %c0_11 = arith.constant 0 : index
    %16 = vector.load %arg6[%c0_10, %c0_11] : memref<8x1xf32, #tpu.memory_space<vmem>>, vector<8x1xf32>
    tpu.vector_store %arg6[%c0_10, %c0_11], %15 {strides = array<i32>} : memref<8x1xf32, #tpu.memory_space<vmem>>, vector<8x1xf32>,
    return
  }
  func.func @transform_0(%arg0: i32) -> (i32, i32) {
    %c0_i32 = arith.constant 0 : i32
    %c0_i32_0 = arith.constant 0 : i32
    return %arg0, %c0_i32 : i32, i32
  }
  func.func @transform_1(%arg0: i32) -> (i32, i32) {
    %c0_i32 = arith.constant 0 : i32
    %c0_i32_0 = arith.constant 0 : i32
    %c0_i32_1 = arith.constant 0 : i32
    return %c0_i32, %c0_i32_0 : i32, i32
  }
  func.func @transform_2(%arg0: i32) -> (i32, i32) {
    %c0_i32 = arith.constant 0 : i32
    %c0_i32_0 = arith.constant 0 : i32
    %c0_i32_1 = arith.constant 0 : i32
    return %c0_i32, %c0_i32_0 : i32, i32
  }
  func.func @transform_3(%arg0: i32) -> (i32, i32) {
    %c0_i32 = arith.constant 0 : i32
    %c0_i32_0 = arith.constant 0 : i32
    %c0_i32_1 = arith.constant 0 : i32
    return %c0_i32, %c0_i32_0 : i32, i32
  }
  func.func @transform_4(%arg0: i32) -> i32 {
    %c0_i32 = arith.constant 0 : i32
    %c0_i32_0 = arith.constant 0 : i32
    return %c0_i32 : i32
  }
  func.func @transform_5(%arg0: i32) -> (i32, i32) {
    %c0_i32 = arith.constant 0 : i32
    %c0_i32_0 = arith.constant 0 : i32
    return %arg0, %c0_i32 : i32, i32
  }
}

</mosaic_0001>

<llo_original>
// kernel: shallow_relu.1
$region0: #{shallow_relu.1}
  #allocation0 [shape = 'u32[]', space=smem, size = 0x4, offset = 0x4, fixed_abs, tag = 'smem constant byte address 0x4 - core index']
  #allocation1 [shape = 'u32[144,128]{1,0:T(1,128)}', space=vmem, size = 0x12000, scoped, tag = 'internal scratch']
  #allocation2 [shape = 'f32[1]{0:T(128)S(6)}', space=smem, size = 0x200, scoped, tag = 'scoped memory for shallow_relu.1']
  %s0 = inlined_call_operand.hbm [shape: f32[8,16], index: 0, kind: input, shape index: {}]
  %s1 = inlined_call_operand.hbm [shape: f32[16,32], index: 1, kind: input, shape index: {}]
  %s2 = inlined_call_operand.vmem [shape: f32[1,32], index: 2, kind: input, shape index: {}]
  %s3 = inlined_call_operand.vmem [shape: f32[1,32], index: 3, kind: input, shape index: {}]
  %s4 = inlined_call_operand.<no memory space> [shape: f32[1], index: 4, kind: input, shape index: {}]
  %s5 = inlined_call_operand.vmem [shape: f32[8,1], index: 5, kind: output, shape index: {}]
  %s6 = sld [smem:[#allocation0]]
  $region38: #{shallow_relu.1} parent=0
    _
  %s8 = ssub.s32 1, %s6
  %s9 = scalar_select 0, %s8, %s6
  %10 = sst [smem:[#allocation2]] %s4
  $region1: #{shallow_relu.1} parent=0
    #allocation3 [shape = 'u8[4096]{0}', space=vmem, size = 0x1000, scoped, tag = 'input window, operand 0, single buffered']
    #allocation4 [shape = 's32[1]{0}', space=sflag, size = 0x4, scoped, tag = 'scoped memory for shallow_relu.1']
    #allocation5 [shape = 'u8[8192]{0}', space=vmem, size = 0x2000, scoped, tag = 'input window, operand 1, single buffered']
    #allocation6 [shape = 's32[1]{0}', space=sflag, size = 0x4, scoped, tag = 'scoped memory for shallow_relu.1']
    %11 = vsyncpa [#allocation4], 0
    %12 = vsyncpa [#allocation6], 0
    // Predicated region
    $region2: #{shallow_relu.1} parent=1 // pred_check
      _
    $region3: #{shallow_relu.1} parent=1 // pred_check_branch
      %14 = sbr.rel (0) target = $region5
    $region4: #{shallow_relu.1} parent=1 // pred_region
      %s16 = ssub.s32 128, 128
      %17 = vsyncadd [#allocation4], %s16
      %s19 = sshll.u32 [#allocation3], 4
      %s20 = int_to_ptr.vmem [resolvable:$true] %s19
      %22 = dma.hbm_to_vmem [thread:$0]  %s0, 128, %s20, [#allocation4]
    $region5: #{shallow_relu.1} parent=1 // pred_fallthru
      _
    // Predicated region
    $region6: #{shallow_relu.1} parent=1 // pred_check
      _
    $region7: #{shallow_relu.1} parent=1 // pred_check_branch
      %24 = sbr.rel (0) target = $region9
    $region8: #{shallow_relu.1} parent=1 // pred_region
      %s26 = ssub.s32 256, 256
      %27 = vsyncadd [#allocation6], %s26
      %s28 = sshll.u32 [#allocation5], 4
      %s29 = int_to_ptr.vmem [resolvable:$true] %s28
      %34 = dma.hbm_to_vmem [thread:$0]  %s1, 256, %s29, [#allocation6], 128, 128, 8
    $region9: #{shallow_relu.1} parent=1 // pred_fallthru
      _
    // Predicated region
    $region10: #{shallow_relu.1} parent=1 // pred_check
      _
    $region11: #{shallow_relu.1} parent=1 // pred_check_branch
      %36 = sbr.rel (0) target = $region13
    $region12: #{shallow_relu.1} parent=1 // pred_region
      _
    $region13: #{shallow_relu.1} parent=1 // pred_fallthru
      _
    // Predicated region
    $region14: #{shallow_relu.1} parent=1 // pred_check
      _
    $region15: #{shallow_relu.1} parent=1 // pred_check_branch
      %38 = sbr.rel (0) target = $region17
    $region16: #{shallow_relu.1} parent=1 // pred_region
      _
    $region17: #{shallow_relu.1} parent=1 // pred_fallthru
      _
    // Predicated region
    $region18: #{shallow_relu.1} parent=1 // pred_check
      _
    $region19: #{shallow_relu.1} parent=1 // pred_check_branch
      %40 = sbr.rel (0) target = $region21
    $region20: #{shallow_relu.1} parent=1 // pred_region
      _
    $region21: #{shallow_relu.1} parent=1 // pred_fallthru
      _
    // Predicated region
    $region22: #{shallow_relu.1} parent=1 // pred_check
      _
    $region23: #{shallow_relu.1} parent=1 // pred_check_branch
      %42 = sbr.rel (0) target = $region25
    $region24: #{shallow_relu.1} parent=1 // pred_region
      %43 = dma.done [#allocation4], 128
    $region25: #{shallow_relu.1} parent=1 // pred_fallthru
      _
    // Predicated region
    $region26: #{shallow_relu.1} parent=1 // pred_check
      _
    $region27: #{shallow_relu.1} parent=1 // pred_check_branch
      %45 = sbr.rel (0) target = $region29
    $region28: #{shallow_relu.1} parent=1 // pred_region
      %46 = dma.done [#allocation6], 256
    $region29: #{shallow_relu.1} parent=1 // pred_fallthru
      _
    %v47 = vld [vmem:[#allocation3] sm:$0xff]
    %v48 = vld [vmem:[#allocation5] sm:$0xff]
    %v49 = vld [vmem:[#allocation5 + $0x8] sm:$0xff]
    %v50 = vld [vmem:[%s2] sm:$0x1]
    %v52 = vlaneseq
    %v53 = vshrl.u32 %v52, 7
    %v54 = vsub.s32 0, %v53
    %v55 = vrot.slane %v50, %v54
    %vm57 = vcmask 130048
    %v59 = vsel %vm57, %v47, 0
    %61 = vmatprep.subr.mxu0 0.0
    %62 = vmatpush1.msra.mxu0 0.0
    %63 = vmatprep.subr.mxu0 0.0
    %64 = vmatpush1.msra.mxu0 0.0
    %65 = vmatprep.subr.mxu0 0.0
    %66 = vmatpush1.msra.mxu0 0.0
    %67 = vmatprep.subr.mxu0 0.0
    %68 = vmatpush1.msra.mxu0 0.0
    %69 = vmatprep.subr.mxu0 0.0
    %70 = vmatpush1.msra.mxu0 0.0
    %71 = vmatprep.subr.mxu0 0.0
    %72 = vmatpush1.msra.mxu0 0.0
    %73 = vmatprep.subr.mxu0 0.0
    %74 = vmatpush1.msra.mxu0 0.0
    %75 = vmatprep.subr.mxu0 0.0
    %76 = vmatpush1.msra.mxu0 0.0
    %77 = vmatprep.subr.mxu0 0.0
    %78 = vmatpush1.msra.mxu0 0.0
    %79 = vmatprep.subr.mxu0 0.0
    %80 = vmatpush1.msra.mxu0 0.0
    %81 = vmatprep.subr.mxu0 0.0
    %82 = vmatpush1.msra.mxu0 0.0
    %83 = vmatprep.subr.mxu0 0.0
    %84 = vmatpush1.msra.mxu0 0.0
    %85 = vmatprep.subr.mxu0 0.0
    %86 = vmatpush1.msra.mxu0 0.0
    %87 = vmatprep.subr.mxu0 0.0
    %88 = vmatpush1.msra.mxu0 0.0
    %89 = vmatprep.subr.mxu0 0.0
    %90 = vmatpush1.msra.mxu0 %v49
    %91 = vmatprep.subr.mxu0 0.0
    %92 = vmatpush1.msra.mxu0 %v48
    %93 = vmatprep.subr.mxu0 0.0
    %94 = vmatpush2.msra.mxu0 0.0
    %95 = vmatprep.subr.mxu0 0.0
    %96 = vmatpush2.msra.mxu0 0.0
    %97 = vmatprep.subr.mxu0 0.0
    %98 = vmatpush2.msra.mxu0 0.0
    %99 = vmatprep.subr.mxu0 0.0
    %100 = vmatpush2.msra.mxu0 0.0
    %101 = vmatprep.subr.mxu0 0.0
    %102 = vmatpush2.msra.mxu0 0.0
    %103 = vmatprep.subr.mxu0 0.0
    %104 = vmatpush2.msra.mxu0 0.0
    %105 = vmatprep.subr.mxu0 0.0
    %106 = vmatpush2.msra.mxu0 0.0
    %107 = vmatprep.subr.mxu0 0.0
    %108 = vmatpush2.msra.mxu0 0.0
    %109 = vmatprep.subr.mxu0 0.0
    %110 = vmatpush2.msra.mxu0 0.0
    %111 = vmatprep.subr.mxu0 0.0
    %112 = vmatpush2.msra.mxu0 0.0
    %113 = vmatprep.subr.mxu0 0.0
    %114 = vmatpush2.msra.mxu0 0.0
    %115 = vmatprep.subr.mxu0 0.0
    %116 = vmatpush2.msra.mxu0 0.0
    %117 = vmatprep.subr.mxu0 0.0
    %118 = vmatpush2.msra.mxu0 0.0
    %119 = vmatprep.subr.mxu0 0.0
    %120 = vmatpush2.msra.mxu0 0.0
    %121 = vmatprep.subr.mxu0 0.0
    %122 = vmatpush2.msra.mxu0 0.0
    %123 = vmatprep.subr.mxu0 0.0
    %124 = vmatpush2.msra.mxu0 0.0
    %125 = vmatprep.mubr.f32.mxu0 0.0
    %126 = vmatmul.mubr.f32.gmra.mxu0 %v59
    %v127 = vpop.f32.mrf.mxu0
    %v128 = vadd.f32 %v55, %v127
    %v129 = vpop.f32.mrf.mxu0
    %130 = vdwg.mxu0
    %v131 = vmax.f32 %v128, 0.0
    %v132 = vld [vmem:[%s3] sm:$0x1]
    %v134 = vlaneseq
    %v135 = vshrl.u32 %v134, 7
    %v136 = vsub.s32 0, %v135
    %v137 = vrot.slane %v132, %v136
    %v139 = vmul.f32 %v131, %v137
    %vm140 = vcmask 261120
    %v141 = vsel %vm140, %v139, 0.0
    %142 = vadd.xlane.f32.xlu0 %v141
    %v143 = vpop.xlane.xlu0 %142
    %s144 = sld [smem:[#allocation2]]
    %v145 = vstv %s144
    %v146 = vadd.f32 %v143, %v145
    %vm147 = vcmask 7168
    %148 = vst.msk [vmem:[%s5] sm:$0xff] %vm147, %v146
    // Predicated region
    $region30: #{shallow_relu.1} parent=1 // pred_check
      _
    $region31: #{shallow_relu.1} parent=1 // pred_check_branch
      %150 = sbr.rel (0) target = $region33
    $region32: #{shallow_relu.1} parent=1 // pred_region
      _
    $region33: #{shallow_relu.1} parent=1 // pred_fallthru
      _
    // Predicated region
    $region34: #{shallow_relu.1} parent=1 // pred_check
      _
    $region35: #{shallow_relu.1} parent=1 // pred_check_branch
      %152 = sbr.rel (0) target = $region37
    $region36: #{shallow_relu.1} parent=1 // pred_region
      _
    $region37: #{shallow_relu.1} parent=1 // pred_fallthru
      _
    %153 = vsyncpa [#allocation4], 1
    %154 = vsyncpa [#allocation6], 1

</llo_original>
